<compile_context>
chip_gen: v5e
topology: v5e:2x2
jax: 0.10.0
libtpu: 0.0.40
codegen_flags: <defaults>
</compile_context>

<pallas_src>
import functools

import jax
import jax.numpy as jnp
from jax.experimental import pallas as pl
from jax.experimental.pallas import tpu as pltpu

LANES = 128
_MAX_TILE_M = 8192           # 8192 x 128 f32 = 4 MiB per input block
_TARGET_BLOCK_BYTES = 4 * 1024 * 1024
_MiB = 1024 * 1024


@functools.lru_cache(maxsize=None)
def _tpu_info_attr(name, default):
    """Best-effort trace-time hardware query; falls back conservatively."""
    try:
        info = pltpu.get_tpu_info()
    except Exception:
        return default
    v = getattr(info, name, None)
    if v is None:
        return default
    try:
        v = int(v)
    except Exception:
        return default
    return v if v > 0 else default


@functools.lru_cache(maxsize=None)
def _num_tensorcores():
    """Detect TensorCores per chip (v7x has 2); default to 1 if unknown."""
    for name in ("num_cores", "num_tensorcores", "tensorcore_count",
                 "num_cores_per_chip", "cores_per_chip", "core_count"):
        v = _tpu_info_attr(name, 0)
        if v >= 1:
            return v
    return 1


def _nmse_kernel(x_ref, t_ref, num_ref, den_ref, *, m_rows, blocks_per_split,
                 tile_m):
    c = pl.program_id(0)   # split index (core-parallel on multi-TC chips)
    k = pl.program_id(1)   # reduction step within split (arbitrary)

    @pl.when(k == 0)
    def _init():
        num_ref[...] = jnp.zeros_like(num_ref)
        den_ref[...] = jnp.zeros_like(den_ref)

    # Logical (unclamped) row-block index.  The DMA index map clamps to the
    # last real block, so duplicated / out-of-range blocks land in the masked
    # tail path below and contribute zero.
    blk = c * blocks_per_split + k
    is_full = (blk + 1) * tile_m <= m_rows

    @pl.when(is_full)
    def _full_block():
        # Steady-state fast path: no iota / compare / select — pure VPU.
        x = x_ref[...].astype(jnp.float32)
        t = t_ref[...].astype(jnp.float32)
        d = x - t
        num_ref[0] += jnp.sum((d * d).reshape(-1, 8, LANES), axis=0)
        den_ref[0] += jnp.sum((t * t).reshape(-1, 8, LANES), axis=0)

    @pl.when(jnp.logical_not(is_full))
    def _tail_block():
        # At most one tail block per call (plus fully-masked duplicates on the
        # core-parallel split): mask out-of-bounds rows (garbage-padded reads).
        row0 = blk * tile_m
        rows = jax.lax.broadcasted_iota(jnp.int32, (tile_m, LANES), 0)
        mask = (row0 + rows) < m_rows
        zero = jnp.float32(0.0)
        x = jnp.where(mask, x_ref[...].astype(jnp.float32), zero)
        t = jnp.where(mask, t_ref[...].astype(jnp.float32), zero)
        d = x - t
        num_ref[0] += jnp.sum((d * d).reshape(-1, 8, LANES), axis=0)
        den_ref[0] += jnp.sum((t * t).reshape(-1, 8, LANES), axis=0)


@functools.partial(jax.jit, static_argnames=("max_tile_m",))
def nmse_loss(input_arr: jax.Array, target_arr: jax.Array, *,
              max_tile_m: int = _MAX_TILE_M) -> jax.Array:
    """NMSE = sum((input - target)^2) / sum(target^2), computed with Pallas."""
    assert input_arr.shape == target_arr.shape

    x = jnp.ravel(input_arr)
    t = jnp.ravel(target_arr)
    n = x.shape[0]

    # Lane-unaligned tail (< 128 elements) is summed in a tiny JAX epilogue so
    # unaligned sizes never pay a full-array jnp.pad copy of both inputs.
    n_main = (n // LANES) * LANES
    if n_main < n:
        xt = x[n_main:].astype(jnp.float32)
        tt = t[n_main:].astype(jnp.float32)
        dt = xt - tt
        tail_num = jnp.sum(dt * dt)
        tail_den = jnp.sum(tt * tt)
    else:
        tail_num = jnp.float32(0.0)
        tail_den = jnp.float32(0.0)

    if n_main == 0:
        # Entire input is smaller than one lane row — pure JAX.
        return tail_num / tail_den

    m = n_main // LANES
    x2d = x[:n_main].reshape(m, LANES)
    t2d = t[:n_main].reshape(m, LANES)

    itemsize = int(x.dtype.itemsize)
    # ~4 MiB per input block (never more rows than needed), multiple of 8 rows.
    tile_m = min(max_tile_m,
                 max(8, _TARGET_BLOCK_BYTES // (LANES * itemsize)),
                 ((m + 7) // 8) * 8)
    tile_m = max(8, (tile_m // 8) * 8)
    nblocks = -(-m // tile_m)

    # Split across TensorCores only when the chip actually has more than one
    # (v7x); on single-TC chips (v5e/v6e) the split is a pure waste.
    num_cores = _num_tensorcores()
    splits = num_cores if (num_cores > 1 and nblocks >= num_cores) else 1
    g = -(-nblocks // splits)
    sem0 = pltpu.CORE_PARALLEL if splits > 1 else pltpu.ARBITRARY

    # Scoped VMEM: double-buffered 2-input footprint + headroom for in-kernel
    # f32 temporaries; >= 32 MiB (v5e default is 16 MiB), <= 48 MiB / 75% of
    # physical VMEM (v7x has only 64 MiB per TC).
    block_bytes = tile_m * LANES * itemsize
    f32_block_bytes = tile_m * LANES * 4
    vmem_cap = _tpu_info_attr("vmem_capacity_bytes", 64 * _MiB)
    vmem_limit = 4 * block_bytes + 8 * f32_block_bytes + 2 * _MiB
    vmem_limit = max(vmem_limit, 32 * _MiB)
    vmem_limit = min(vmem_limit, (3 * vmem_cap) // 4, 48 * _MiB)

    def in_map(c, k):
        # Clamp so the DMA never goes out of bounds; the kernel fully masks
        # any duplicated (clamped) block so it contributes zero.
        return (jnp.minimum(c * g + k, nblocks - 1), 0)

    kernel = functools.partial(
        _nmse_kernel, m_rows=m, blocks_per_split=g, tile_m=tile_m)

    num_out, den_out = pl.pallas_call(
        kernel,
        out_shape=(
            jax.ShapeDtypeStruct((splits, 8, LANES), jnp.float32),
            jax.ShapeDtypeStruct((splits, 8, LANES), jnp.float32),
        ),
        grid_spec=pltpu.PrefetchScalarGridSpec(
            num_scalar_prefetch=0,
            grid=(splits, g),
            in_specs=[
                pl.BlockSpec((tile_m, LANES), in_map),
                pl.BlockSpec((tile_m, LANES), in_map),
            ],
            out_specs=[
                pl.BlockSpec((1, 8, LANES), lambda c, k: (c, 0, 0)),
                pl.BlockSpec((1, 8, LANES), lambda c, k: (c, 0, 0)),
            ],
        ),
        compiler_params=pltpu.CompilerParams(
            dimension_semantics=(sem0, pltpu.ARBITRARY),
            vmem_limit_bytes=int(vmem_limit),
        ),
    )(x2d, t2d)

    # Tiny epilogue: cross-lane reduce the (splits, 8, 128) partials and divide.
    num = jnp.sum(num_out) + tail_num
    den = jnp.sum(den_out) + tail_den
    return num / den


if __name__ == "__main__":
    key = jax.random.PRNGKey(0)

    # (shape, forced max_tile_m) — the forced small tile exercises the
    # multi-block reduction loop (fast path + masked tail block) at small size.
    cases = [
        ((2, 4, 16, 16), None),    # lane-aligned, single full block (fast path)
        ((5, 7, 129), None),       # unaligned numel: epilogue tail + masked tail block
        ((3, 7), None),            # < 128 elements: pure-JAX epilogue path
        ((4, 3, 97, 33), 16),      # forced small tile: multi-block + tail block
    ]
    for i, (shape, cap) in enumerate(cases):
        k1, k2 = jax.random.split(jax.random.fold_in(key, i))
        inp = jax.random.normal(k1, shape, dtype=jnp.float32)
        tgt = jax.random.normal(k2, shape, dtype=jnp.float32) + 0.5

        if cap is None:
            out = nmse_loss(inp, tgt)
        else:
            out = nmse_loss(inp, tgt, max_tile_m=cap)
        out = jax.block_until_ready(out)

        # Pure-JAX reference (PyTorch NMSELoss with reduction='mean').
        ref = jnp.mean((inp - tgt) ** 2) / jnp.mean(tgt ** 2)
        assert jnp.allclose(out, ref, rtol=1e-4, atol=1e-6), (shape, out, ref)

    print("KERNEL_OK")
</pallas_src>

<mosaic_0001>
module attributes {stable_mosaic.version = 11 : i64} {
  func.func @_nmse_kernel(%arg0: i32, %arg1: i32, %arg2: memref<16x128xf32, #tpu.memory_space<vmem>>, %arg3: memref<16x128xf32, #tpu.memory_space<vmem>>, %arg4: memref<1x8x128xf32, #tpu.memory_space<vmem>>, %arg5: memref<1x8x128xf32, #tpu.memory_space<vmem>>) attributes {dimension_semantics = [#tpu.dimension_semantics<arbitrary>, #tpu.dimension_semantics<arbitrary>], iteration_bounds = array<i64: 1, 1>, scalar_prefetch = 0 : i64, scratch_operands = 0 : i64, tpu.core_type = #tpu.core_type<tc>, window_params = [{transform_indices = @transform_0, window_bounds = array<i64: 16, 128>}, {transform_indices = @transform_1, window_bounds = array<i64: 16, 128>}, {transform_indices = @transform_2, window_bounds = array<i64: 1, 8, 128>}, {transform_indices = @transform_3, window_bounds = array<i64: 1, 8, 128>}]} {
    %c0_i32 = arith.constant 0 : i32
    %0 = arith.cmpi eq, %arg1, %c0_i32 : i32
    %1 = arith.extui %0 : i1 to i32
    %c0_i32_0 = arith.constant 0 : i32
    %2 = arith.cmpi ne, %1, %c0_i32_0 : i32
    scf.if %2 {
      %cst = arith.constant 0.000000e+00 : f32
      %13 = vector.broadcast %cst : f32 to vector<1x8x128xf32>
      %c0 = arith.constant 0 : index
      %c0_5 = arith.constant 0 : index
      %c0_6 = arith.constant 0 : index
      %14 = vector.load %arg4[%c0, %c0_5, %c0_6] : memref<1x8x128xf32, #tpu.memory_space<vmem>>, vector<1x8x128xf32>
      tpu.vector_store %arg4[%c0, %c0_5, %c0_6], %13 {strides = array<i32>} : memref<1x8x128xf32, #tpu.memory_space<vmem>>, vector<1x8x128xf32>,
      %cst_7 = arith.constant 0.000000e+00 : f32
      %15 = vector.broadcast %cst_7 : f32 to vector<1x8x128xf32>
      %c0_8 = arith.constant 0 : index
      %c0_9 = arith.constant 0 : index
      %c0_10 = arith.constant 0 : index
      %16 = vector.load %arg5[%c0_8, %c0_9, %c0_10] : memref<1x8x128xf32, #tpu.memory_space<vmem>>, vector<1x8x128xf32>
      tpu.vector_store %arg5[%c0_8, %c0_9, %c0_10], %15 {strides = array<i32>} : memref<1x8x128xf32, #tpu.memory_space<vmem>>, vector<1x8x128xf32>,
    } else {
    }
    %c1_i32 = arith.constant 1 : i32
    %3 = arith.muli %arg0, %c1_i32 : i32
    %4 = arith.addi %3, %arg1 : i32
    %c1_i32_1 = arith.constant 1 : i32
    %5 = arith.addi %4, %c1_i32_1 : i32
    %c16_i32 = arith.constant 16 : i32
    %6 = arith.muli %5, %c16_i32 : i32
    %c16_i32_2 = arith.constant 16 : i32
    %7 = arith.cmpi sle, %6, %c16_i32_2 : i32
    %8 = arith.extui %7 : i1 to i32
    %c0_i32_3 = arith.constant 0 : i32
    %9 = arith.cmpi ne, %8, %c0_i32_3 : i32
    scf.if %9 {
      %c0 = arith.constant 0 : index
      %c0_5 = arith.constant 0 : index
      %13 = vector.load %arg2[%c0, %c0_5] : memref<16x128xf32, #tpu.memory_space<vmem>>, vector<16x128xf32>
      %c0_6 = arith.constant 0 : index
      %c0_7 = arith.constant 0 : index
      %14 = vector.load %arg3[%c0_6, %c0_7] : memref<16x128xf32, #tpu.memory_space<vmem>>, vector<16x128xf32>
      %15 = arith.subf %13, %14 : vector<16x128xf32>
      %c0_8 = arith.constant 0 : index
      %c0_9 = arith.constant 0 : index
      %c0_10 = arith.constant 0 : index
      %16 = vector.load %arg4[%c0_8, %c0_9, %c0_10] : memref<1x8x128xf32, #tpu.memory_space<vmem>>, vector<1x8x128xf32>
      %17 = vector.shape_cast %16 : vector<1x8x128xf32> to vector<8x128xf32>
      %18 = arith.mulf %15, %15 : vector<16x128xf32>
      %19 = vector.shape_cast %18 : vector<16x128xf32> to vector<2x8x128xf32>
      %cst = arith.constant dense<0.000000e+00> : vector<8x128xf32>
      %20 = vector.multi_reduction <add>, %19, %cst [0] : vector<2x8x128xf32> to vector<8x128xf32>
      %21 = arith.addf %17, %20 : vector<8x128xf32>
      %c0_11 = arith.constant 0 : index
      %c0_12 = arith.constant 0 : index
      %c0_13 = arith.constant 0 : index
      %22 = vector.load %arg4[%c0_11, %c0_12, %c0_13] : memref<1x8x128xf32, #tpu.memory_space<vmem>>, vector<1x8x128xf32>
      %23 = vector.shape_cast %22 : vector<1x8x128xf32> to vector<8x128xf32>
      %24 = vector.shape_cast %21 : vector<8x128xf32> to vector<1x8x128xf32>
      tpu.vector_store %arg4[%c0_11, %c0_12, %c0_13], %24 {strides = array<i32>} : memref<1x8x128xf32, #tpu.memory_space<vmem>>, vector<1x8x128xf32>,
      %c0_14 = arith.constant 0 : index
      %c0_15 = arith.constant 0 : index
      %c0_16 = arith.constant 0 : index
      %25 = vector.load %arg5[%c0_14, %c0_15, %c0_16] : memref<1x8x128xf32, #tpu.memory_space<vmem>>, vector<1x8x128xf32>
      %26 = vector.shape_cast %25 : vector<1x8x128xf32> to vector<8x128xf32>
      %27 = arith.mulf %14, %14 : vector<16x128xf32>
      %28 = vector.shape_cast %27 : vector<16x128xf32> to vector<2x8x128xf32>
      %cst_17 = arith.constant dense<0.000000e+00> : vector<8x128xf32>
      %29 = vector.multi_reduction <add>, %28, %cst_17 [0] : vector<2x8x128xf32> to vector<8x128xf32>
      %30 = arith.addf %26, %29 : vector<8x128xf32>
      %c0_18 = arith.constant 0 : index
      %c0_19 = arith.constant 0 : index
      %c0_20 = arith.constant 0 : index
      %31 = vector.load %arg5[%c0_18, %c0_19, %c0_20] : memref<1x8x128xf32, #tpu.memory_space<vmem>>, vector<1x8x128xf32>
      %32 = vector.shape_cast %31 : vector<1x8x128xf32> to vector<8x128xf32>
      %33 = vector.shape_cast %30 : vector<8x128xf32> to vector<1x8x128xf32>
      tpu.vector_store %arg5[%c0_18, %c0_19, %c0_20], %33 {strides = array<i32>} : memref<1x8x128xf32, #tpu.memory_space<vmem>>, vector<1x8x128xf32>,
    } else {
    }
    %true = arith.constant true
    %10 = arith.xori %7, %true : i1
    %11 = arith.extui %10 : i1 to i32
    %c0_i32_4 = arith.constant 0 : i32
    %12 = arith.cmpi ne, %11, %c0_i32_4 : i32
    scf.if %12 {
      %c16_i32_5 = arith.constant 16 : i32
      %13 = arith.muli %4, %c16_i32_5 : i32
      %14 = tpu.iota {dimensions = array<i32: 0>} : vector<16x128xi32>
      %15 = vector.broadcast %13 : i32 to vector<16x128xi32>
      %16 = arith.addi %15, %14 : vector<16x128xi32>
      %c16_i32_6 = arith.constant 16 : i32
      %17 = vector.broadcast %c16_i32_6 : i32 to vector<16x128xi32>
      %18 = arith.cmpi slt, %16, %17 : vector<16x128xi32>
      %c0 = arith.constant 0 : index
      %c0_7 = arith.constant 0 : index
      %19 = vector.load %arg2[%c0, %c0_7] : memref<16x128xf32, #tpu.memory_space<vmem>>, vector<16x128xf32>
      %cst = arith.constant 0.000000e+00 : f32
      %20 = vector.broadcast %cst : f32 to vector<16x128xf32>
      %21 = arith.select %18, %19, %20 : vector<16x128xi1>, vector<16x128xf32>
      %c0_8 = arith.constant 0 : index
      %c0_9 = arith.constant 0 : index
      %22 = vector.load %arg3[%c0_8, %c0_9] : memref<16x128xf32, #tpu.memory_space<vmem>>, vector<16x128xf32>
      %cst_10 = arith.constant 0.000000e+00 : f32
      %23 = vector.broadcast %cst_10 : f32 to vector<16x128xf32>
      %24 = arith.select %18, %22, %23 : vector<16x128xi1>, vector<16x128xf32>
      %25 = arith.subf %21, %24 : vector<16x128xf32>
      %c0_11 = arith.constant 0 : index
      %c0_12 = arith.constant 0 : index
      %c0_13 = arith.constant 0 : index
      %26 = vector.load %arg4[%c0_11, %c0_12, %c0_13] : memref<1x8x128xf32, #tpu.memory_space<vmem>>, vector<1x8x128xf32>
      %27 = vector.shape_cast %26 : vector<1x8x128xf32> to vector<8x128xf32>
      %28 = arith.mulf %25, %25 : vector<16x128xf32>
      %29 = vector.shape_cast %28 : vector<16x128xf32> to vector<2x8x128xf32>
      %cst_14 = arith.constant dense<0.000000e+00> : vector<8x128xf32>
      %30 = vector.multi_reduction <add>, %29, %cst_14 [0] : vector<2x8x128xf32> to vector<8x128xf32>
      %31 = arith.addf %27, %30 : vector<8x128xf32>
      %c0_15 = arith.constant 0 : index
      %c0_16 = arith.constant 0 : index
      %c0_17 = arith.constant 0 : index
      %32 = vector.load %arg4[%c0_15, %c0_16, %c0_17] : memref<1x8x128xf32, #tpu.memory_space<vmem>>, vector<1x8x128xf32>
      %33 = vector.shape_cast %32 : vector<1x8x128xf32> to vector<8x128xf32>
      %34 = vector.shape_cast %31 : vector<8x128xf32> to vector<1x8x128xf32>
      tpu.vector_store %arg4[%c0_15, %c0_16, %c0_17], %34 {strides = array<i32>} : memref<1x8x128xf32, #tpu.memory_space<vmem>>, vector<1x8x128xf32>,
      %c0_18 = arith.constant 0 : index
      %c0_19 = arith.constant 0 : index
      %c0_20 = arith.constant 0 : index
      %35 = vector.load %arg5[%c0_18, %c0_19, %c0_20] : memref<1x8x128xf32, #tpu.memory_space<vmem>>, vector<1x8x128xf32>
      %36 = vector.shape_cast %35 : vector<1x8x128xf32> to vector<8x128xf32>
      %37 = arith.mulf %24, %24 : vector<16x128xf32>
      %38 = vector.shape_cast %37 : vector<16x128xf32> to vector<2x8x128xf32>
      %cst_21 = arith.constant dense<0.000000e+00> : vector<8x128xf32>
      %39 = vector.multi_reduction <add>, %38, %cst_21 [0] : vector<2x8x128xf32> to vector<8x128xf32>
      %40 = arith.addf %36, %39 : vector<8x128xf32>
      %c0_22 = arith.constant 0 : index
      %c0_23 = arith.constant 0 : index
      %c0_24 = arith.constant 0 : index
      %41 = vector.load %arg5[%c0_22, %c0_23, %c0_24] : memref<1x8x128xf32, #tpu.memory_space<vmem>>, vector<1x8x128xf32>
      %42 = vector.shape_cast %41 : vector<1x8x128xf32> to vector<8x128xf32>
      %43 = vector.shape_cast %40 : vector<8x128xf32> to vector<1x8x128xf32>
      tpu.vector_store %arg5[%c0_22, %c0_23, %c0_24], %43 {strides = array<i32>} : memref<1x8x128xf32, #tpu.memory_space<vmem>>, vector<1x8x128xf32>,
    } else {
    }
    return
  }
  func.func @transform_0(%arg0: i32, %arg1: i32) -> (i32, i32) {
    %c1_i32 = arith.constant 1 : i32
    %0 = arith.muli %arg0, %c1_i32 : i32
    %1 = arith.addi %0, %arg1 : i32
    %c0_i32 = arith.constant 0 : i32
    %2 = arith.minsi %1, %c0_i32 : i32
    %c0_i32_0 = arith.constant 0 : i32
    %c0_i32_1 = arith.constant 0 : i32
    return %2, %c0_i32_0 : i32, i32
  }
  func.func @transform_1(%arg0: i32, %arg1: i32) -> (i32, i32) {
    %c1_i32 = arith.constant 1 : i32
    %0 = arith.muli %arg0, %c1_i32 : i32
    %1 = arith.addi %0, %arg1 : i32
    %c0_i32 = arith.constant 0 : i32
    %2 = arith.minsi %1, %c0_i32 : i32
    %c0_i32_0 = arith.constant 0 : i32
    %c0_i32_1 = arith.constant 0 : i32
    return %2, %c0_i32_0 : i32, i32
  }
  func.func @transform_2(%arg0: i32, %arg1: i32) -> (i32, i32, i32) {
    %c0_i32 = arith.constant 0 : i32
    %c0_i32_0 = arith.constant 0 : i32
    %c0_i32_1 = arith.constant 0 : i32
    return %arg0, %c0_i32, %c0_i32_0 : i32, i32, i32
  }
  func.func @transform_3(%arg0: i32, %arg1: i32) -> (i32, i32, i32) {
    %c0_i32 = arith.constant 0 : i32
    %c0_i32_0 = arith.constant 0 : i32
    %c0_i32_1 = arith.constant 0 : i32
    return %arg0, %c0_i32, %c0_i32_0 : i32, i32, i32
  }
}

</mosaic_0001>

<llo_original>
// kernel: nmse_loss.1
$region0: #{nmse_loss.1}
  #allocation0 [shape = 'u32[]', space=smem, size = 0x4, offset = 0x4, fixed_abs, tag = 'smem constant byte address 0x4 - core index']
  #allocation1 [shape = 'u32[72,128]{1,0:T(1,128)}', space=vmem, size = 0x9000, scoped, tag = 'internal scratch']
  %s0 = inlined_call_operand.vmem [shape: f32[16,128], index: 0, kind: input, shape index: {}]
  %s1 = inlined_call_operand.vmem [shape: f32[16,128], index: 1, kind: input, shape index: {}]
  %s2 = inlined_call_operand.vmem [shape: f32[1,8,128], index: 2, kind: output, shape index: {0}]
  %s3 = inlined_call_operand.vmem [shape: f32[1,8,128], index: 3, kind: output, shape index: {1}]
  %4 = xla_tuple %s2, %s3
  %s5 = sld [smem:[#allocation0]]
  $region38: #{nmse_loss.1} parent=0
    _
  %s7 = ssub.s32 1, %s5
  %s8 = scalar_select 0, %s7, %s5
  // Predicated region
  $region2: #{nmse_loss.1} parent=0 // pred_check
    _
  $region3: #{nmse_loss.1} parent=0 // pred_check_branch
    %10 = sbr.rel (0) target = $region5
  $region4: #{nmse_loss.1} parent=0 // pred_region
    %s11 = sadd.s32 0, 0
    %p12 = scmp.lt.s32.totalorder %s11, 0
    %s13 = scalar_select %p12, %s11, 0
    %s14 = smul.u32 2, %s13
    %p15 = scmp.lt.s32.totalorder %s14, 1
    %s16 = scalar_select %p15, %s14, 1
    %s17 = smul.addr %s16, 8
    %s18 = scalar_lea.vmem %s0, %s17
    %s19 = sadd.s32 0, 0
    %p20 = scmp.lt.s32.totalorder %s19, 0
    %s21 = scalar_select %p20, %s19, 0
    %s22 = smul.u32 2, %s21
  $region5: #{nmse_loss.1} parent=0 // pred_fallthru
    _
  // Predicated region
  $region6: #{nmse_loss.1} parent=0 // pred_check
    _
  $region7: #{nmse_loss.1} parent=0 // pred_check_branch
    %24 = sbr.rel (0) target = $region9
  $region8: #{nmse_loss.1} parent=0 // pred_region
    %s25 = sadd.s32 0, 0
    %p26 = scmp.lt.s32.totalorder %s25, 0
    %s27 = scalar_select %p26, %s25, 0
    %s28 = smul.u32 2, %s27
    %p29 = scmp.lt.s32.totalorder %s28, 1
    %s30 = scalar_select %p29, %s28, 1
    %s31 = smul.addr %s30, 8
    %s32 = scalar_lea.vmem %s1, %s31
    %s33 = sadd.s32 0, 0
    %p34 = scmp.lt.s32.totalorder %s33, 0
    %s35 = scalar_select %p34, %s33, 0
    %s36 = smul.u32 2, %s35
  $region9: #{nmse_loss.1} parent=0 // pred_fallthru
    _
  %s37 = sadd.s32 0, 0
  %p38 = scmp.lt.s32.totalorder %s37, 0
  %s39 = scalar_select %p38, %s37, 0
  %s40 = smul.u32 2, %s39
  %p41 = scmp.lt.s32.totalorder %s40, 1
  %s42 = scalar_select %p41, %s40, 1
  %s43 = smul.addr %s42, 8
  %s44 = scalar_lea.vmem %s0, %s43
  %s45 = sadd.s32 0, 0
  %p46 = scmp.lt.s32.totalorder %s45, 0
  %s47 = scalar_select %p46, %s45, 0
  %s48 = smul.u32 2, %s47
  %p49 = scmp.lt.s32.totalorder %s48, 1
  %s50 = scalar_select %p49, %s48, 1
  %s51 = smul.addr %s50, 8
  %s52 = scalar_lea.vmem %s1, %s51
  %s53 = sadd.s32 0, 0
  %p54 = scmp.lt.s32.totalorder %s53, 0
  %s55 = scalar_select %p54, %s53, 0
  %s56 = smul.u32 2, %s55
  %p57 = scmp.lt.s32.totalorder %s56, 1
  %s58 = scalar_select %p57, %s56, 1
  %s59 = smul.addr %s58, 8
  %s60 = scalar_lea.vmem %s0, %s59
  %s61 = sadd.s32 0, 0
  %p62 = scmp.lt.s32.totalorder %s61, 0
  %s63 = scalar_select %p62, %s61, 0
  %s64 = smul.u32 2, %s63
  %s65 = sadd.s32 0, 0
  %p66 = scmp.lt.s32.totalorder %s65, 0
  %s67 = scalar_select %p66, %s65, 0
  %s68 = smul.u32 2, %s67
  %p69 = scmp.lt.s32.totalorder %s68, 1
  %s70 = scalar_select %p69, %s68, 1
  %s71 = smul.addr %s70, 8
  %s72 = scalar_lea.vmem %s1, %s71
  %s73 = sadd.s32 0, 0
  %p74 = scmp.lt.s32.totalorder %s73, 0
  %s75 = scalar_select %p74, %s73, 0
  %s76 = smul.u32 2, %s75
  %p77 = scmp.eq.s32.totalorder 0, 0
  // Predicated region
  $region10: #{nmse_loss.1} parent=0 // pred_check
    %p78 = pneg %p77
  $region11: #{nmse_loss.1} parent=0 // pred_check_branch
    %80 = sbr.rel (%p78) target = $region13
  $region12: #{nmse_loss.1} parent=0 // pred_region
    %81 = vst [vmem:[%s2] sm:$0xff] 0.0
    %82 = vst [vmem:[%s3] sm:$0xff] 0.0
  $region13: #{nmse_loss.1} parent=0 // pred_fallthru
    _
  %s83 = sadd.s32 0, 0
  %s84 = sadd.s32 %s83, 1
  %s85 = smul.u32 %s84, 16
  %p86 = scmp.le.s32.totalorder %s85, 16
  // Predicated region
  $region14: #{nmse_loss.1} parent=0 // pred_check
    %p87 = pneg %p86
  $region15: #{nmse_loss.1} parent=0 // pred_check_branch
    %89 = sbr.rel (%p87) target = $region17
  $region16: #{nmse_loss.1} parent=0 // pred_region
    %v90 = vld [vmem:[%s60] sm:$0xff]
    %v91 = vld [vmem:[%s60 + $0x8] sm:$0xff]
    %v92 = vld [vmem:[%s72] sm:$0xff]
    %v93 = vld [vmem:[%s72 + $0x8] sm:$0xff]
    %v94 = vsub.f32 %v90, %v92
    %v95 = vsub.f32 %v91, %v93
    %v96 = vld [vmem:[%s2] sm:$0xff]
    %v97 = vmul.f32 %v94, %v94
    %v98 = vmul.f32 %v95, %v95
    %v99 = vadd.f32 %v97, %v98
    %v100 = vadd.f32 %v96, %v99
    %101 = vst [vmem:[%s2] sm:$0xff] %v100
    %v102 = vld [vmem:[%s3] sm:$0xff]
    %v103 = vmul.f32 %v92, %v92
    %v104 = vmul.f32 %v93, %v93
    %v105 = vadd.f32 %v103, %v104
    %v106 = vadd.f32 %v102, %v105
    %107 = vst [vmem:[%s3] sm:$0xff] %v106
  $region17: #{nmse_loss.1} parent=0 // pred_fallthru
    _
  %p108 = scmp.gt.s32.totalorder %s85, 16
  // Predicated region
  $region18: #{nmse_loss.1} parent=0 // pred_check
    %p109 = pneg %p108
  $region19: #{nmse_loss.1} parent=0 // pred_check_branch
    %111 = sbr.rel (%p109) target = $region21
  $region20: #{nmse_loss.1} parent=0 // pred_region
    %s112 = smul.u32 %s83, 16
    %v113 = vlaneseq
    %v114 = vshrl.u32 %v113, 7
    %v115 = vadd.s32 %v114, 8
    %v116 = vstv %s112
    %v117 = vadd.s32 %v116, %v114
    %v118 = vadd.s32 %v116, %v115
    %vm119 = vcmp.lt.s32.totalorder %v117, 16
    %vm120 = vcmp.lt.s32.totalorder %v118, 16
    %v121 = vld [vmem:[%s60] sm:$0xff]
    %v122 = vld [vmem:[%s60 + $0x8] sm:$0xff]
    %v123 = vsel %vm119, %v121, 0.0
    %v124 = vsel %vm120, %v122, 0.0
    %v125 = vld [vmem:[%s72] sm:$0xff]
    %v126 = vld [vmem:[%s72 + $0x8] sm:$0xff]
    %v127 = vsel %vm119, %v125, 0.0
    %v128 = vsel %vm120, %v126, 0.0
    %v129 = vsub.f32 %v123, %v127
    %v130 = vsub.f32 %v124, %v128
    %v131 = vld [vmem:[%s2] sm:$0xff]
    %v132 = vmul.f32 %v129, %v129
    %v133 = vmul.f32 %v130, %v130
    %v134 = vadd.f32 %v132, %v133
    %v135 = vadd.f32 %v131, %v134
    %136 = vst [vmem:[%s2] sm:$0xff] %v135
    %v137 = vld [vmem:[%s3] sm:$0xff]
    %v138 = vmul.f32 %v127, %v127
    %v139 = vmul.f32 %v128, %v128
    %v140 = vadd.f32 %v138, %v139
    %v141 = vadd.f32 %v137, %v140
    %142 = vst [vmem:[%s3] sm:$0xff] %v141
  $region21: #{nmse_loss.1} parent=0 // pred_fallthru
    _
  // Predicated region
  $region22: #{nmse_loss.1} parent=0 // pred_check
    _
  $region23: #{nmse_loss.1} parent=0 // pred_check_branch
    %144 = sbr.rel (0) target = $region25
  $region24: #{nmse_loss.1} parent=0 // pred_region
    _
  $region25: #{nmse_loss.1} parent=0 // pred_fallthru
    _
  // Predicated region
  $region26: #{nmse_loss.1} parent=0 // pred_check
    _
  $region27: #{nmse_loss.1} parent=0 // pred_check_branch
    %146 = sbr.rel (0) target = $region29
  $region28: #{nmse_loss.1} parent=0 // pred_region
    _
  $region29: #{nmse_loss.1} parent=0 // pred_fallthru
    _
  // Predicated region
  $region30: #{nmse_loss.1} parent=0 // pred_check
    _
  $region31: #{nmse_loss.1} parent=0 // pred_check_branch
    %148 = sbr.rel (0) target = $region33
  $region32: #{nmse_loss.1} parent=0 // pred_region
    _
  $region33: #{nmse_loss.1} parent=0 // pred_fallthru
    _
  // Predicated region
  $region34: #{nmse_loss.1} parent=0 // pred_check
    _
  $region35: #{nmse_loss.1} parent=0 // pred_check_branch
    %150 = sbr.rel (0) target = $region37
  $region36: #{nmse_loss.1} parent=0 // pred_region
    _
  $region37: #{nmse_loss.1} parent=0 // pred_fallthru
    _

</llo_original>
